<compile_context>
chip_gen: v6e
topology: v6e:2x2x1
jax: 0.10.0
libtpu: 0.0.40
codegen_flags: <defaults>
</compile_context>

<pallas_src>
import functools

import jax
import jax.numpy as jnp
from jax.experimental import pallas as pl
from jax.experimental.pallas import tpu as pltpu

NEG_SLOPE = 0.01  # torch.nn.LeakyReLU default negative_slope
HIDDEN = 64


def _leaky_relu(x):
    return jnp.where(x > 0, x, NEG_SLOPE * x)


def critic_kernel(x_ref, w1_ref, b1_ref, w2_ref, b2_ref, w3_ref, b3_ref, o_ref):
    x = x_ref[...]  # (state_dim, TB) f32, batch on lanes

    # Layer 1: (64, state_dim) @ (state_dim, TB) -> (64, TB), + bias, LeakyReLU
    h1 = jnp.dot(w1_ref[...], x, preferred_element_type=jnp.float32) + b1_ref[...]
    h1 = _leaky_relu(h1)

    # Layer 2: (64, 64) @ (64, TB) -> (64, TB), + bias, LeakyReLU
    h2 = jnp.dot(w2_ref[...], h1, preferred_element_type=jnp.float32) + b2_ref[...]
    h2 = _leaky_relu(h2)

    # Layer 3: Linear(64, 1) as VPU multiply + sublane reduction (avoids an
    # M=1 MXU pass that would use <1% of the systolic array).
    o_ref[...] = jnp.sum(h2 * w3_ref[...], axis=0, keepdims=True) + b3_ref[...]


@functools.partial(jax.jit, static_argnames=("tile_b",))
def critic_forward(x, params, *, tile_b=1024):
    """x: (B, state_dim) float32 -> (B, 1) float32."""
    w1, b1, w2, b2, w3, b3 = params
    B, state_dim = x.shape

    # Batch tile: multiple of 128 (lane width); don't over-pad tiny batches.
    tb = min(tile_b, pl.cdiv(B, 128) * 128)
    n_tiles = pl.cdiv(B, tb)
    b_pad = n_tiles * tb

    # Batch-on-lanes layout; zero-pad batch tail up to a multiple of tb.
    x_t = x.T  # (state_dim, B)
    if b_pad != B:
        x_t = jnp.pad(x_t, ((0, 0), (0, b_pad - B)))

    flops = 2 * b_pad * (state_dim * HIDDEN + HIDDEN * HIDDEN + HIDDEN)
    param_bytes = 4 * (w1.size + b1.size + w2.size + b2.size + w3.size + b3.size)
    bytes_accessed = 4 * b_pad * (state_dim + 1) + param_bytes

    const = lambda i: (0, 0)  # params: DMA once, VMEM-resident across tiles

    out_t = pl.pallas_call(
        critic_kernel,
        out_shape=jax.ShapeDtypeStruct((1, b_pad), jnp.float32),
        grid=(n_tiles,),
        in_specs=[
            pl.BlockSpec((state_dim, tb), lambda i: (0, i)),  # x^T, streamed
            pl.BlockSpec((HIDDEN, state_dim), const),         # w1
            pl.BlockSpec((HIDDEN, 1), const),                 # b1
            pl.BlockSpec((HIDDEN, HIDDEN), const),            # w2
            pl.BlockSpec((HIDDEN, 1), const),                 # b2
            pl.BlockSpec((HIDDEN, 1), const),                 # w3 (column)
            pl.BlockSpec((1, 1), const),                      # b3
        ],
        out_specs=pl.BlockSpec((1, tb), lambda i: (0, i)),    # lane-dense out
        compiler_params=pltpu.CompilerParams(
            dimension_semantics=("parallel",),                # megacore on v7x
        ),
        cost_estimate=pl.CostEstimate(
            flops=flops, transcendentals=0, bytes_accessed=bytes_accessed
        ),
    )(x_t, w1, b1, w2, b2, w3, b3)

    # Undo padding + transpose back to (B, 1).
    return out_t[:, :B].T


def init_params(key, state_dim, hidden=HIDDEN):
    """Deterministic synthetic parameters (same math as the torch module).

    Layout (kernel-friendly, batch-on-lanes):
      w1: (hidden, state_dim)   b1: (hidden, 1)
      w2: (hidden, hidden)      b2: (hidden, 1)
      w3: (hidden, 1)  (== torch W3^T)   b3: (1, 1)
    """
    k1, k2, k3, k4, k5, k6 = jax.random.split(key, 6)
    scale1 = 1.0 / jnp.sqrt(state_dim)
    scale2 = 1.0 / jnp.sqrt(hidden)
    w1 = jax.random.uniform(k1, (hidden, state_dim), jnp.float32, -scale1, scale1)
    b1 = jax.random.uniform(k2, (hidden, 1), jnp.float32, -scale1, scale1)
    w2 = jax.random.uniform(k3, (hidden, hidden), jnp.float32, -scale2, scale2)
    b2 = jax.random.uniform(k4, (hidden, 1), jnp.float32, -scale2, scale2)
    w3 = jax.random.uniform(k5, (hidden, 1), jnp.float32, -scale2, scale2)
    b3 = jax.random.uniform(k6, (1, 1), jnp.float32, -scale2, scale2)
    return (w1, b1, w2, b2, w3, b3)


def critic_reference(x, params):
    """Pure-JAX reference of the torch forward pass (for verification)."""
    w1, b1, w2, b2, w3, b3 = params
    h1 = _leaky_relu(x @ w1.T + b1.T)
    h2 = _leaky_relu(h1 @ w2.T + b2.T)
    return h2 @ w3 + b3


if __name__ == "__main__":
    key = jax.random.PRNGKey(0)
    k_params, k_x = jax.random.split(key)

    batch = 8
    state_dim = 32

    params = init_params(k_params, state_dim)
    x = jax.random.normal(k_x, (batch, state_dim), dtype=jnp.float32)

    out = critic_forward(x, params)
    out = jax.block_until_ready(out)

    ref = critic_reference(x, params)
    assert out.shape == (batch, 1), out.shape
    assert jnp.allclose(out, ref, atol=1e-5, rtol=1e-5), (out, ref)

    print("KERNEL_OK")
</pallas_src>

<mosaic_0001>
module attributes {stable_mosaic.version = 11 : i64} {
  func.func @critic_kernel(%arg0: i32, %arg1: memref<32x128xf32, #tpu.memory_space<vmem>>, %arg2: memref<64x32xf32, #tpu.memory_space<vmem>>, %arg3: memref<64x1xf32, #tpu.memory_space<vmem>>, %arg4: memref<64x64xf32, #tpu.memory_space<vmem>>, %arg5: memref<64x1xf32, #tpu.memory_space<vmem>>, %arg6: memref<64x1xf32, #tpu.memory_space<vmem>>, %arg7: memref<1x1xf32, #tpu.memory_space<vmem>>, %arg8: memref<1x128xf32, #tpu.memory_space<vmem>>) attributes {dimension_semantics = [#tpu.dimension_semantics<parallel>], iteration_bounds = array<i64: 1>, scalar_prefetch = 0 : i64, scratch_operands = 0 : i64, tpu.core_type = #tpu.core_type<tc>, window_params = [{transform_indices = @transform_0, window_bounds = array<i64: 32, 128>}, {pipeline_mode = #tpu.pipeline_mode<synchronous>, transform_indices = @transform_1, window_bounds = array<i64: 64, 32>}, {pipeline_mode = #tpu.pipeline_mode<synchronous>, transform_indices = @transform_2, window_bounds = array<i64: 64, 1>}, {pipeline_mode = #tpu.pipeline_mode<synchronous>, transform_indices = @transform_3, window_bounds = array<i64: 64, 64>}, {pipeline_mode = #tpu.pipeline_mode<synchronous>, transform_indices = @transform_4, window_bounds = array<i64: 64, 1>}, {pipeline_mode = #tpu.pipeline_mode<synchronous>, transform_indices = @transform_5, window_bounds = array<i64: 64, 1>}, {pipeline_mode = #tpu.pipeline_mode<synchronous>, transform_indices = @transform_6, window_bounds = array<i64: 1, 1>}, {transform_indices = @transform_7, window_bounds = array<i64: 1, 128>}]} {
    %c0 = arith.constant 0 : index
    %c0_0 = arith.constant 0 : index
    %0 = vector.load %arg1[%c0, %c0_0] : memref<32x128xf32, #tpu.memory_space<vmem>>, vector<32x128xf32>
    %c0_1 = arith.constant 0 : index
    %c0_2 = arith.constant 0 : index
    %1 = vector.load %arg2[%c0_1, %c0_2] : memref<64x32xf32, #tpu.memory_space<vmem>>, vector<64x32xf32>
    %cst = arith.constant dense<0.000000e+00> : vector<64x128xf32>
    %2 = tpu.matmul %1, %0, %cst {dimension_numbers = #tpu.dot_dimension_numbers<[1], [0], [0], [1], [0, 0, 1, 1], [], []>} : vector<64x32xf32>, vector<32x128xf32>, vector<64x128xf32> -> vector<64x128xf32>
    %c0_3 = arith.constant 0 : index
    %c0_4 = arith.constant 0 : index
    %3 = vector.load %arg3[%c0_3, %c0_4] : memref<64x1xf32, #tpu.memory_space<vmem>>, vector<64x1xf32>
    %4 = vector.broadcast %3 : vector<64x1xf32> to vector<64x128xf32>
    %5 = arith.addf %2, %4 : vector<64x128xf32>
    %cst_5 = arith.constant 0.000000e+00 : f32
    %6 = vector.broadcast %cst_5 : f32 to vector<64x128xf32>
    %7 = arith.cmpf ogt, %5, %6 : vector<64x128xf32>
    %cst_6 = arith.constant 0.00999999977 : f32
    %8 = vector.broadcast %cst_6 : f32 to vector<64x128xf32>
    %9 = arith.mulf %8, %5 : vector<64x128xf32>
    %10 = arith.select %7, %5, %9 : vector<64x128xi1>, vector<64x128xf32>
    %c0_7 = arith.constant 0 : index
    %c0_8 = arith.constant 0 : index
    %11 = vector.load %arg4[%c0_7, %c0_8] : memref<64x64xf32, #tpu.memory_space<vmem>>, vector<64x64xf32>
    %cst_9 = arith.constant dense<0.000000e+00> : vector<64x128xf32>
    %12 = tpu.matmul %11, %10, %cst_9 {dimension_numbers = #tpu.dot_dimension_numbers<[1], [0], [0], [1], [0, 0, 1, 1], [], []>} : vector<64x64xf32>, vector<64x128xf32>, vector<64x128xf32> -> vector<64x128xf32>
    %c0_10 = arith.constant 0 : index
    %c0_11 = arith.constant 0 : index
    %13 = vector.load %arg5[%c0_10, %c0_11] : memref<64x1xf32, #tpu.memory_space<vmem>>, vector<64x1xf32>
    %14 = vector.broadcast %13 : vector<64x1xf32> to vector<64x128xf32>
    %15 = arith.addf %12, %14 : vector<64x128xf32>
    %cst_12 = arith.constant 0.000000e+00 : f32
    %16 = vector.broadcast %cst_12 : f32 to vector<64x128xf32>
    %17 = arith.cmpf ogt, %15, %16 : vector<64x128xf32>
    %cst_13 = arith.constant 0.00999999977 : f32
    %18 = vector.broadcast %cst_13 : f32 to vector<64x128xf32>
    %19 = arith.mulf %18, %15 : vector<64x128xf32>
    %20 = arith.select %17, %15, %19 : vector<64x128xi1>, vector<64x128xf32>
    %c0_14 = arith.constant 0 : index
    %c0_15 = arith.constant 0 : index
    %21 = vector.load %arg6[%c0_14, %c0_15] : memref<64x1xf32, #tpu.memory_space<vmem>>, vector<64x1xf32>
    %22 = vector.broadcast %21 : vector<64x1xf32> to vector<64x128xf32>
    %23 = arith.mulf %20, %22 : vector<64x128xf32>
    %cst_16 = arith.constant dense<0.000000e+00> : vector<128xf32>
    %24 = vector.multi_reduction <add>, %23, %cst_16 [0] : vector<64x128xf32> to vector<128xf32>
    %25 = vector.shape_cast %24 : vector<128xf32> to vector<1x128xf32>
    %c0_17 = arith.constant 0 : index
    %c0_18 = arith.constant 0 : index
    %26 = vector.load %arg7[%c0_17, %c0_18] : memref<1x1xf32, #tpu.memory_space<vmem>>, vector<1x1xf32>
    %27 = vector.broadcast %26 : vector<1x1xf32> to vector<1x128xf32>
    %28 = arith.addf %25, %27 : vector<1x128xf32>
    %c0_19 = arith.constant 0 : index
    %c0_20 = arith.constant 0 : index
    %29 = vector.load %arg8[%c0_19, %c0_20] : memref<1x128xf32, #tpu.memory_space<vmem>>, vector<1x128xf32>
    tpu.vector_store %arg8[%c0_19, %c0_20], %28 {strides = array<i32>} : memref<1x128xf32, #tpu.memory_space<vmem>>, vector<1x128xf32>,
    return
  }
  func.func @transform_0(%arg0: i32) -> (i32, i32) {
    %c0_i32 = arith.constant 0 : i32
    %c0_i32_0 = arith.constant 0 : i32
    return %c0_i32, %arg0 : i32, i32
  }
  func.func @transform_1(%arg0: i32) -> (i32, i32) {
    %c0_i32 = arith.constant 0 : i32
    %c0_i32_0 = arith.constant 0 : i32
    %c0_i32_1 = arith.constant 0 : i32
    return %c0_i32, %c0_i32_0 : i32, i32
  }
  func.func @transform_2(%arg0: i32) -> (i32, i32) {
    %c0_i32 = arith.constant 0 : i32
    %c0_i32_0 = arith.constant 0 : i32
    %c0_i32_1 = arith.constant 0 : i32
    return %c0_i32, %c0_i32_0 : i32, i32
  }
  func.func @transform_3(%arg0: i32) -> (i32, i32) {
    %c0_i32 = arith.constant 0 : i32
    %c0_i32_0 = arith.constant 0 : i32
    %c0_i32_1 = arith.constant 0 : i32
    return %c0_i32, %c0_i32_0 : i32, i32
  }
  func.func @transform_4(%arg0: i32) -> (i32, i32) {
    %c0_i32 = arith.constant 0 : i32
    %c0_i32_0 = arith.constant 0 : i32
    %c0_i32_1 = arith.constant 0 : i32
    return %c0_i32, %c0_i32_0 : i32, i32
  }
  func.func @transform_5(%arg0: i32) -> (i32, i32) {
    %c0_i32 = arith.constant 0 : i32
    %c0_i32_0 = arith.constant 0 : i32
    %c0_i32_1 = arith.constant 0 : i32
    return %c0_i32, %c0_i32_0 : i32, i32
  }
  func.func @transform_6(%arg0: i32) -> (i32, i32) {
    %c0_i32 = arith.constant 0 : i32
    %c0_i32_0 = arith.constant 0 : i32
    %c0_i32_1 = arith.constant 0 : i32
    return %c0_i32, %c0_i32_0 : i32, i32
  }
  func.func @transform_7(%arg0: i32) -> (i32, i32) {
    %c0_i32 = arith.constant 0 : i32
    %c0_i32_0 = arith.constant 0 : i32
    return %c0_i32, %arg0 : i32, i32
  }
}

</mosaic_0001>

<llo_original>
// kernel: critic_forward.1
$region0: #{critic_forward.1}
  #allocation0 [shape = 'u32[]', space=smem, size = 0x4, offset = 0x4, fixed_abs, tag = 'smem constant byte address 0x4 - core index']
  #allocation1 [shape = 'u32[144,128]{1,0:T(1,128)}', space=vmem, size = 0x12000, scoped, tag = 'internal scratch']
  #allocation2 [shape = 'f32[1,1]{1,0:T(1,128)S(1)}', space=vmem, size = 0x200, scoped, tag = 'scoped memory for critic_forward.1']
  %s0 = inlined_call_operand.vmem [shape: f32[32,128], index: 0, kind: input, shape index: {}]
  %s1 = inlined_call_operand.vmem [shape: f32[64,32], index: 1, kind: input, shape index: {}]
  %s2 = inlined_call_operand.vmem [shape: f32[64,1], index: 2, kind: input, shape index: {}]
  %s3 = inlined_call_operand.vmem [shape: f32[64,64], index: 3, kind: input, shape index: {}]
  %s4 = inlined_call_operand.vmem [shape: f32[64,1], index: 4, kind: input, shape index: {}]
  %s5 = inlined_call_operand.vmem [shape: f32[64,1], index: 5, kind: input, shape index: {}]
  %s6 = inlined_call_operand.<no memory space> [shape: f32[1,1], index: 6, kind: input, shape index: {}]
  %s7 = inlined_call_operand.vmem [shape: f32[1,128], index: 7, kind: output, shape index: {}]
  %s8 = sld [smem:[#allocation0]]
  $region38: #{critic_forward.1} parent=0
    _
  %s10 = ssub.s32 1, %s8
  %s11 = scalar_select 0, %s10, %s8
  %v12 = vstv %s6
  %13 = vst [vmem:[#allocation2] sm:$0x1] %v12
  // Predicated region
  $region2: #{critic_forward.1} parent=0 // pred_check
    _
  $region3: #{critic_forward.1} parent=0 // pred_check_branch
    %15 = sbr.rel (0) target = $region5
  $region4: #{critic_forward.1} parent=0 // pred_region
    _
  $region5: #{critic_forward.1} parent=0 // pred_fallthru
    _
  // Predicated region
  $region6: #{critic_forward.1} parent=0 // pred_check
    _
  $region7: #{critic_forward.1} parent=0 // pred_check_branch
    %17 = sbr.rel (0) target = $region9
  $region8: #{critic_forward.1} parent=0 // pred_region
    _
  $region9: #{critic_forward.1} parent=0 // pred_fallthru
    _
  // Predicated region
  $region10: #{critic_forward.1} parent=0 // pred_check
    _
  $region11: #{critic_forward.1} parent=0 // pred_check_branch
    %19 = sbr.rel (0) target = $region13
  $region12: #{critic_forward.1} parent=0 // pred_region
    _
  $region13: #{critic_forward.1} parent=0 // pred_fallthru
    _
  // Predicated region
  $region14: #{critic_forward.1} parent=0 // pred_check
    _
  $region15: #{critic_forward.1} parent=0 // pred_check_branch
    %21 = sbr.rel (0) target = $region17
  $region16: #{critic_forward.1} parent=0 // pred_region
    _
  $region17: #{critic_forward.1} parent=0 // pred_fallthru
    _
  // Predicated region
  $region18: #{critic_forward.1} parent=0 // pred_check
    _
  $region19: #{critic_forward.1} parent=0 // pred_check_branch
    %23 = sbr.rel (0) target = $region21
  $region20: #{critic_forward.1} parent=0 // pred_region
    _
  $region21: #{critic_forward.1} parent=0 // pred_fallthru
    _
  // Predicated region
  $region22: #{critic_forward.1} parent=0 // pred_check
    _
  $region23: #{critic_forward.1} parent=0 // pred_check_branch
    %25 = sbr.rel (0) target = $region25
  $region24: #{critic_forward.1} parent=0 // pred_region
    _
  $region25: #{critic_forward.1} parent=0 // pred_fallthru
    _
  // Predicated region
  $region26: #{critic_forward.1} parent=0 // pred_check
    _
  $region27: #{critic_forward.1} parent=0 // pred_check_branch
    %27 = sbr.rel (0) target = $region29
  $region28: #{critic_forward.1} parent=0 // pred_region
    _
  $region29: #{critic_forward.1} parent=0 // pred_fallthru
    _
  %v28 = vld [vmem:[%s0] sm:$0xff]
  %v29 = vld [vmem:[%s0 + $0x8] sm:$0xff]
  %v30 = vld [vmem:[%s0 + $0x10] sm:$0xff]
  %v31 = vld [vmem:[%s0 + $0x18] sm:$0xff]
  %v32 = vld [vmem:[%s1] sm:$0xff]
  %v33 = vld [vmem:[%s1 + $0x8] sm:$0xff]
  %v34 = vld [vmem:[%s1 + $0x10] sm:$0xff]
  %v35 = vld [vmem:[%s1 + $0x18] sm:$0xff]
  %v36 = vld [vmem:[%s1 + $0x20] sm:$0xff]
  %v37 = vld [vmem:[%s1 + $0x28] sm:$0xff]
  %v38 = vld [vmem:[%s1 + $0x30] sm:$0xff]
  %v39 = vld [vmem:[%s1 + $0x38] sm:$0xff]
  %v40 = vld [vmem:[%s2] sm:$0xff]
  %v41 = vld [vmem:[%s2 + $0x8] sm:$0xff]
  %v42 = vld [vmem:[%s2 + $0x10] sm:$0xff]
  %v43 = vld [vmem:[%s2 + $0x18] sm:$0xff]
  %v44 = vld [vmem:[%s2 + $0x20] sm:$0xff]
  %v45 = vld [vmem:[%s2 + $0x28] sm:$0xff]
  %v46 = vld [vmem:[%s2 + $0x30] sm:$0xff]
  %v47 = vld [vmem:[%s2 + $0x38] sm:$0xff]
  %49 = vset.pattern.permute.xlu0 0
  %50 = vperm.xlu0 %49, %v40
  %v51 = vpop.permute.xlu0 %50
  %54 = vset.pattern.permute.xlu0 0
  %55 = vperm.xlu0 %54, %v41
  %v56 = vpop.permute.xlu0 %55
  %59 = vset.pattern.permute.xlu0 0
  %60 = vperm.xlu0 %59, %v42
  %v61 = vpop.permute.xlu0 %60
  %64 = vset.pattern.permute.xlu0 0
  %65 = vperm.xlu0 %64, %v43
  %v66 = vpop.permute.xlu0 %65
  %69 = vset.pattern.permute.xlu0 0
  %70 = vperm.xlu0 %69, %v44
  %v71 = vpop.permute.xlu0 %70
  %74 = vset.pattern.permute.xlu0 0
  %75 = vperm.xlu0 %74, %v45
  %v76 = vpop.permute.xlu0 %75
  %79 = vset.pattern.permute.xlu0 0
  %80 = vperm.xlu0 %79, %v46
  %v81 = vpop.permute.xlu0 %80
  %84 = vset.pattern.permute.xlu0 0
  %85 = vperm.xlu0 %84, %v47
  %v86 = vpop.permute.xlu0 %85
  %vm88 = vcmask 261120
  %v90 = vsel %vm88, %v32, 0
  %v93 = vsel %vm88, %v33, 0
  %v96 = vsel %vm88, %v34, 0
  %v99 = vsel %vm88, %v35, 0
  %v102 = vsel %vm88, %v36, 0
  %v105 = vsel %vm88, %v37, 0
  %v108 = vsel %vm88, %v38, 0
  %v111 = vsel %vm88, %v39, 0
  %113 = vmatprep.subr.mxu0 0.0
  %114 = vmatpush1.msra.mxu0 0.0
  %115 = vmatprep.subr.mxu0 0.0
  %116 = vmatpush1.msra.mxu0 0.0
  %117 = vmatprep.subr.mxu0 0.0
  %118 = vmatpush1.msra.mxu0 0.0
  %119 = vmatprep.subr.mxu0 0.0
  %120 = vmatpush1.msra.mxu0 0.0
  %121 = vmatprep.subr.mxu0 0.0
  %122 = vmatpush1.msra.mxu0 0.0
  %123 = vmatprep.subr.mxu0 0.0
  %124 = vmatpush1.msra.mxu0 0.0
  %125 = vmatprep.subr.mxu0 0.0
  %126 = vmatpush1.msra.mxu0 0.0
  %127 = vmatprep.subr.mxu0 0.0
  %128 = vmatpush1.msra.mxu0 0.0
  %129 = vmatprep.subr.mxu0 0.0
  %130 = vmatpush1.msra.mxu0 0.0
  %131 = vmatprep.subr.mxu0 0.0
  %132 = vmatpush1.msra.mxu0 0.0
  %133 = vmatprep.subr.mxu0 0.0
  %134 = vmatpush1.msra.mxu0 0.0
  %135 = vmatprep.subr.mxu0 0.0
  %136 = vmatpush1.msra.mxu0 0.0
  %137 = vmatprep.subr.mxu0 0.0
  %138 = vmatpush1.msra.mxu0 %v31
  %139 = vmatprep.subr.mxu0 0.0
  %140 = vmatpush1.msra.mxu0 %v30
  %141 = vmatprep.subr.mxu0 0.0
  %142 = vmatpush1.msra.mxu0 %v29
  %143 = vmatprep.subr.mxu0 0.0
  %144 = vmatpush1.msra.mxu0 %v28
  %145 = vmatprep.subr.mxu0 0.0
  %146 = vmatpush2.msra.mxu0 0.0
  %147 = vmatprep.subr.mxu0 0.0
  %148 = vmatpush2.msra.mxu0 0.0
  %149 = vmatprep.subr.mxu0 0.0
  %150 = vmatpush2.msra.mxu0 0.0
  %151 = vmatprep.subr.mxu0 0.0
  %152 = vmatpush2.msra.mxu0 0.0
  %153 = vmatprep.subr.mxu0 0.0
  %154 = vmatpush2.msra.mxu0 0.0
  %155 = vmatprep.subr.mxu0 0.0
  %156 = vmatpush2.msra.mxu0 0.0
  %157 = vmatprep.subr.mxu0 0.0
  %158 = vmatpush2.msra.mxu0 0.0
  %159 = vmatprep.subr.mxu0 0.0
  %160 = vmatpush2.msra.mxu0 0.0
  %161 = vmatprep.subr.mxu0 0.0
  %162 = vmatpush2.msra.mxu0 0.0
  %163 = vmatprep.subr.mxu0 0.0
  %164 = vmatpush2.msra.mxu0 0.0
  %165 = vmatprep.subr.mxu0 0.0
  %166 = vmatpush2.msra.mxu0 0.0
  %167 = vmatprep.subr.mxu0 0.0
  %168 = vmatpush2.msra.mxu0 0.0
  %169 = vmatprep.subr.mxu0 0.0
  %170 = vmatpush2.msra.mxu0 0.0
  %171 = vmatprep.subr.mxu0 0.0
  %172 = vmatpush2.msra.mxu0 0.0
  %173 = vmatprep.subr.mxu0 0.0
  %174 = vmatpush2.msra.mxu0 0.0
  %175 = vmatprep.subr.mxu0 0.0
  %176 = vmatpush2.msra.mxu0 0.0
  %177 = vmatprep.mubr.f32.mxu0 0.0
  %178 = vmatmul.mubr.f32.gmra.mxu0 %v90
  %v179 = vpop.f32.mrf.mxu0
  %v180 = vadd.f32 %v51, %v179
  %v181 = vpop.f32.mrf.mxu0
  %182 = vmatprep.mubr.f32.mxu0 0.0
  %183 = vmatmul.mubr.f32.gmra.mxu0 %v93
  %v184 = vpop.f32.mrf.mxu0
  %v185 = vadd.f32 %v56, %v184
  %v186 = vpop.f32.mrf.mxu0
  %187 = vmatprep.mubr.f32.mxu0 0.0
  %188 = vmatmul.mubr.f32.gmra.mxu0 %v96
  %v189 = vpop.f32.mrf.mxu0
  %v190 = vadd.f32 %v61, %v189
  %v191 = vpop.f32.mrf.mxu0
  %192 = vmatprep.mubr.f32.mxu0 0.0
  %193 = vmatmul.mubr.f32.gmra.mxu0 %v99
  %v194 = vpop.f32.mrf.mxu0
  %v195 = vadd.f32 %v66, %v194
  %v196 = vpop.f32.mrf.mxu0
  %197 = vmatprep.mubr.f32.mxu0 0.0
  %198 = vmatmul.mubr.f32.gmra.mxu0 %v102
  %v199 = vpop.f32.mrf.mxu0
  %v200 = vadd.f32 %v71, %v199
  %v201 = vpop.f32.mrf.mxu0
  %202 = vmatprep.mubr.f32.mxu0 0.0
  %203 = vmatmul.mubr.f32.gmra.mxu0 %v105
  %v204 = vpop.f32.mrf.mxu0
  %v205 = vadd.f32 %v76, %v204
  %v206 = vpop.f32.mrf.mxu0
  %207 = vmatprep.mubr.f32.mxu0 0.0
  %208 = vmatmul.mubr.f32.gmra.mxu0 %v108
  %v209 = vpop.f32.mrf.mxu0
  %v210 = vadd.f32 %v81, %v209
  %v211 = vpop.f32.mrf.mxu0
  %212 = vmatprep.mubr.f32.mxu0 0.0
  %213 = vmatmul.mubr.f32.gmra.mxu0 %v111
  %v214 = vpop.f32.mrf.mxu0
  %v215 = vadd.f32 %v86, %v214
  %v216 = vpop.f32.mrf.mxu0
  %217 = vdwg.mxu0
  %vm218 = vcmp.gt.f32.partialorder %v180, 0.0
  %vm219 = vcmp.gt.f32.partialorder %v185, 0.0
  %vm220 = vcmp.gt.f32.partialorder %v190, 0.0
  %vm221 = vcmp.gt.f32.partialorder %v195, 0.0
  %vm222 = vcmp.gt.f32.partialorder %v200, 0.0
  %vm223 = vcmp.gt.f32.partialorder %v205, 0.0
  %vm224 = vcmp.gt.f32.partialorder %v210, 0.0
  %vm225 = vcmp.gt.f32.partialorder %v215, 0.0
  %v226 = vmul.f32 %v180, 0.01
  %v227 = vmul.f32 %v185, 0.01
  %v228 = vmul.f32 %v190, 0.01
  %v229 = vmul.f32 %v195, 0.01
  %v230 = vmul.f32 %v200, 0.01
  %v231 = vmul.f32 %v205, 0.01
  %v232 = vmul.f32 %v210, 0.01
  %v233 = vmul.f32 %v215, 0.01
  %v234 = vsel %vm218, %v180, %v226
  %v235 = vsel %vm219, %v185, %v227
  %v236 = vsel %vm220, %v190, %v228
  %v237 = vsel %vm221, %v195, %v229
  %v238 = vsel %vm222, %v200, %v230
  %v239 = vsel %vm223, %v205, %v231
  %v240 = vsel %vm224, %v210, %v232
  %v241 = vsel %vm225, %v215, %v233
  %v242 = vld [vmem:[%s3] sm:$0xff]
  %v243 = vld [vmem:[%s3 + $0x8] sm:$0xff]
  %v244 = vld [vmem:[%s3 + $0x10] sm:$0xff]
  %v245 = vld [vmem:[%s3 + $0x18] sm:$0xff]
  %v246 = vld [vmem:[%s3 + $0x20] sm:$0xff]
  %v247 = vld [vmem:[%s3 + $0x28] sm:$0xff]
  %v248 = vld [vmem:[%s3 + $0x30] sm:$0xff]
  %v249 = vld [vmem:[%s3 + $0x38] sm:$0xff]
  %v250 = vld [vmem:[%s4] sm:$0xff]
  %v251 = vld [vmem:[%s4 + $0x8] sm:$0xff]
  %v252 = vld [vmem:[%s4 + $0x10] sm:$0xff]
  %v253 = vld [vmem:[%s4 + $0x18] sm:$0xff]
  %v254 = vld [vmem:[%s4 + $0x20] sm:$0xff]
  %v255 = vld [vmem:[%s4 + $0x28] sm:$0xff]
  %v256 = vld [vmem:[%s4 + $0x30] sm:$0xff]
  %v257 = vld [vmem:[%s4 + $0x38] sm:$0xff]
  %259 = vset.pattern.permute.xlu0 0
  %260 = vperm.xlu0 %259, %v250
  %v261 = vpop.permute.xlu0 %260
  %264 = vset.pattern.permute.xlu0 0
  %265 = vperm.xlu0 %264, %v251
  %v266 = vpop.permute.xlu0 %265
  %269 = vset.pattern.permute.xlu0 0
  %270 = vperm.xlu0 %269, %v252
  %v271 = vpop.permute.xlu0 %270
  %274 = vset.pattern.permute.xlu0 0
  %275 = vperm.xlu0 %274, %v253
  %v276 = vpop.permute.xlu0 %275
  %279 = vset.pattern.permute.xlu0 0
  %280 = vperm.xlu0 %279, %v254
  %v281 = vpop.permute.xlu0 %280
  %284 = vset.pattern.permute.xlu0 0
  %285 = vperm.xlu0 %284, %v255
  %v286 = vpop.permute.xlu0 %285
  %289 = vset.pattern.permute.xlu0 0
  %290 = vperm.xlu0 %289, %v256
  %v291 = vpop.permute.xlu0 %290
  %294 = vset.pattern.permute.xlu0 0
  %295 = vperm.xlu0 %294, %v257
  %v296 = vpop.permute.xlu0 %295
  %vm298 = vcmask 523264
  %v300 = vsel %vm298, %v242, 0
  %v303 = vsel %vm298, %v243, 0
  %v306 = vsel %vm298, %v244, 0
  %v309 = vsel %vm298, %v245, 0
  %v312 = vsel %vm298, %v246, 0
  %v315 = vsel %vm298, %v247, 0
  %v318 = vsel %vm298, %v248, 0
  %v321 = vsel %vm298, %v249, 0
  %323 = vmatprep.subr.mxu0 0.0
  %324 = vmatpush1.msra.mxu0 0.0
  %325 = vmatprep.subr.mxu0 0.0
  %326 = vmatpush1.msra.mxu0 0.0
  %327 = vmatprep.subr.mxu0 0.0
  %328 = vmatpush1.msra.mxu0 0.0
  %329 = vmatprep.subr.mxu0 0.0
  %330 = vmatpush1.msra.mxu0 0.0
  %331 = vmatprep.subr.mxu0 0.0
  %332 = vmatpush1.msra.mxu0 0.0
  %333 = vmatprep.subr.mxu0 0.0
  %334 = vmatpush1.msra.mxu0 0.0
  %335 = vmatprep.subr.mxu0 0.0
  %336 = vmatpush1.msra.mxu0 0.0
  %337 = vmatprep.subr.mxu0 0.0
  %338 = vmatpush1.msra.mxu0 0.0
  %339 = vmatprep.subr.mxu0 0.0
  %340 = vmatpush1.msra.mxu0 %v241
  %341 = vmatprep.subr.mxu0 0.0
  %342 = vmatpush1.msra.mxu0 %v240
  %343 = vmatprep.subr.mxu0 0.0
  %344 = vmatpush1.msra.mxu0 %v239
  %345 = vmatprep.subr.mxu0 0.0
  %346 = vmatpush1.msra.mxu0 %v238
  %347 = vmatprep.subr.mxu0 0.0
  %348 = vmatpush1.msra.mxu0 %v237
  %349 = vmatprep.subr.mxu0 0.0
  %350 = vmatpush1.msra.mxu0 %v236
  %351 = vmatprep.subr.mxu0 0.0
  %352 = vmatpush1.msra.mxu0 %v235
  %353 = vmatprep.subr.mxu0 0.0
  %354 = vmatpush1.msra.mxu0 %v234
  %355 = vmatprep.subr.mxu0 0.0
  %356 = vmatpush2.msra.mxu0 0.0
  %357 = vmatprep.subr.mxu0 0.0
  %358 = vmatpush2.msra.mxu0 0.0
  %359 = vmatprep.subr.mxu0 0.0
  %360 = vmatpush2.msra.mxu0 0.0
  %361 = vmatprep.subr.mxu0 0.0
  %362 = vmatpush2.msra.mxu0 0.0
  %363 = vmatprep.subr.mxu0 0.0
  %364 = vmatpush2.msra.mxu0 0.0
  %365 = vmatprep.subr.mxu0 0.0
  %366 = vmatpush2.msra.mxu0 0.0
  %367 = vmatprep.subr.mxu0 0.0
  %368 = vmatpush2.msra.mxu0 0.0
  %369 = vmatprep.subr.mxu0 0.0
  %370 = vmatpush2.msra.mxu0 0.0
  %371 = vmatprep.subr.mxu0 0.0
  %372 = vmatpush2.msra.mxu0 0.0
  %373 = vmatprep.subr.mxu0 0.0
  %374 = vmatpush2.msra.mxu0 0.0
  %375 = vmatprep.subr.mxu0 0.0
  %376 = vmatpush2.msra.mxu0 0.0
  %377 = vmatprep.subr.mxu0 0.0
  %378 = vmatpush2.msra.mxu0 0.0
  %379 = vmatprep.subr.mxu0 0.0
  %380 = vmatpush2.msra.mxu0 0.0
  %381 = vmatprep.subr.mxu0 0.0
  %382 = vmatpush2.msra.mxu0 0.0
  %383 = vmatprep.subr.mxu0 0.0
  %384 = vmatpush2.msra.mxu0 0.0
  %385 = vmatprep.subr.mxu0 0.0
  %386 = vmatpush2.msra.mxu0 0.0
  %387 = vmatprep.mubr.f32.mxu0 0.0
  %388 = vmatmul.mubr.f32.gmra.mxu0 %v300
  %v389 = vpop.f32.mrf.mxu0
  %v390 = vadd.f32 %v261, %v389
  %v391 = vpop.f32.mrf.mxu0
  %392 = vmatprep.mubr.f32.mxu0 0.0
  %393 = vmatmul.mubr.f32.gmra.mxu0 %v303
  %v394 = vpop.f32.mrf.mxu0
  %v395 = vadd.f32 %v266, %v394
  %v396 = vpop.f32.mrf.mxu0
  %397 = vmatprep.mubr.f32.mxu0 0.0
  %398 = vmatmul.mubr.f32.gmra.mxu0 %v306
  %v399 = vpop.f32.mrf.mxu0
  %v400 = vadd.f32 %v271, %v399
  %v401 = vpop.f32.mrf.mxu0
  %402 = vmatprep.mubr.f32.mxu0 0.0
  %403 = vmatmul.mubr.f32.gmra.mxu0 %v309
  %v404 = vpop.f32.mrf.mxu0
  %v405 = vadd.f32 %v276, %v404
  %v406 = vpop.f32.mrf.mxu0
  %407 = vmatprep.mubr.f32.mxu0 0.0
  %408 = vmatmul.mubr.f32.gmra.mxu0 %v312
  %v409 = vpop.f32.mrf.mxu0
  %v410 = vadd.f32 %v281, %v409
  %v411 = vpop.f32.mrf.mxu0
  %412 = vmatprep.mubr.f32.mxu0 0.0
  %413 = vmatmul.mubr.f32.gmra.mxu0 %v315
  %v414 = vpop.f32.mrf.mxu0
  %v415 = vadd.f32 %v286, %v414
  %v416 = vpop.f32.mrf.mxu0
  %417 = vmatprep.mubr.f32.mxu0 0.0
  %418 = vmatmul.mubr.f32.gmra.mxu0 %v318
  %v419 = vpop.f32.mrf.mxu0
  %v420 = vadd.f32 %v291, %v419
  %v421 = vpop.f32.mrf.mxu0
  %422 = vmatprep.mubr.f32.mxu0 0.0
  %423 = vmatmul.mubr.f32.gmra.mxu0 %v321
  %v424 = vpop.f32.mrf.mxu0
  %v425 = vadd.f32 %v296, %v424
  %v426 = vpop.f32.mrf.mxu0
  %427 = vdwg.mxu0
  %vm428 = vcmp.gt.f32.partialorder %v390, 0.0
  %vm429 = vcmp.gt.f32.partialorder %v395, 0.0
  %vm430 = vcmp.gt.f32.partialorder %v400, 0.0
  %vm431 = vcmp.gt.f32.partialorder %v405, 0.0
  %vm432 = vcmp.gt.f32.partialorder %v410, 0.0
  %vm433 = vcmp.gt.f32.partialorder %v415, 0.0
  %vm434 = vcmp.gt.f32.partialorder %v420, 0.0
  %vm435 = vcmp.gt.f32.partialorder %v425, 0.0
  %v436 = vmul.f32 %v390, 0.01
  %v437 = vmul.f32 %v395, 0.01
  %v438 = vmul.f32 %v400, 0.01
  %v439 = vmul.f32 %v405, 0.01
  %v440 = vmul.f32 %v410, 0.01
  %v441 = vmul.f32 %v415, 0.01
  %v442 = vmul.f32 %v420, 0.01
  %v443 = vmul.f32 %v425, 0.01
  %v444 = vsel %vm428, %v390, %v436
  %v445 = vsel %vm429, %v395, %v437
  %v446 = vsel %vm430, %v400, %v438
  %v447 = vsel %vm431, %v405, %v439
  %v448 = vsel %vm432, %v410, %v440
  %v449 = vsel %vm433, %v415, %v441
  %v450 = vsel %vm434, %v420, %v442
  %v451 = vsel %vm435, %v425, %v443
  %v452 = vld [vmem:[%s5] sm:$0xff]
  %v453 = vld [vmem:[%s5 + $0x8] sm:$0xff]
  %v454 = vld [vmem:[%s5 + $0x10] sm:$0xff]
  %v455 = vld [vmem:[%s5 + $0x18] sm:$0xff]
  %v456 = vld [vmem:[%s5 + $0x20] sm:$0xff]
  %v457 = vld [vmem:[%s5 + $0x28] sm:$0xff]
  %v458 = vld [vmem:[%s5 + $0x30] sm:$0xff]
  %v459 = vld [vmem:[%s5 + $0x38] sm:$0xff]
  %461 = vset.pattern.permute.xlu0 0
  %462 = vperm.xlu0 %461, %v452
  %v463 = vpop.permute.xlu0 %462
  %466 = vset.pattern.permute.xlu0 0
  %467 = vperm.xlu0 %466, %v453
  %v468 = vpop.permute.xlu0 %467
  %471 = vset.pattern.permute.xlu0 0
  %472 = vperm.xlu0 %471, %v454
  %v473 = vpop.permute.xlu0 %472
  %476 = vset.pattern.permute.xlu0 0
  %477 = vperm.xlu0 %476, %v455
  %v478 = vpop.permute.xlu0 %477
  %481 = vset.pattern.permute.xlu0 0
  %482 = vperm.xlu0 %481, %v456
  %v483 = vpop.permute.xlu0 %482
  %486 = vset.pattern.permute.xlu0 0
  %487 = vperm.xlu0 %486, %v457
  %v488 = vpop.permute.xlu0 %487
  %491 = vset.pattern.permute.xlu0 0
  %492 = vperm.xlu0 %491, %v458
  %v493 = vpop.permute.xlu0 %492
  %496 = vset.pattern.permute.xlu0 0
  %497 = vperm.xlu0 %496, %v459
  %v498 = vpop.permute.xlu0 %497
  %v500 = vmul.f32 %v444, %v463
  %v501 = vmul.f32 %v445, %v468
  %v502 = vmul.f32 %v446, %v473
  %v503 = vmul.f32 %v447, %v478
  %v504 = vmul.f32 %v448, %v483
  %v505 = vmul.f32 %v449, %v488
  %v506 = vmul.f32 %v450, %v493
  %v507 = vmul.f32 %v451, %v498
  %v508 = vadd.f32 %v500, %v501
  %v509 = vadd.f32 %v508, %v502
  %v510 = vadd.f32 %v509, %v503
  %v511 = vadd.f32 %v510, %v504
  %v512 = vadd.f32 %v511, %v505
  %v513 = vadd.f32 %v512, %v506
  %v514 = vadd.f32 %v513, %v507
  %v515 = vrot.slane %v514, 4
  %v516 = vadd.f32 %v514, %v515
  %v517 = vrot.slane %v516, 2
  %v518 = vadd.f32 %v516, %v517
  %v519 = vrot.slane %v518, 1
  %v520 = vadd.f32 %v518, %v519
  %v521 = vld [vmem:[#allocation2] sm:$0x1]
  %523 = vset.pattern.permute.xlu0 0
  %524 = vperm.xlu0 %523, %v521
  %v525 = vpop.permute.xlu0 %524
  %v527 = vlaneseq
  %v528 = vshrl.u32 %v527, 7
  %v529 = vsub.s32 0, %v528
  %v530 = vrot.slane %v525, %v529
  %v531 = vadd.f32 %v520, %v530
  %532 = vst [vmem:[%s7] sm:$0x1] %v531
  // Predicated region
  $region30: #{critic_forward.1} parent=0 // pred_check
    _
  $region31: #{critic_forward.1} parent=0 // pred_check_branch
    %534 = sbr.rel (0) target = $region33
  $region32: #{critic_forward.1} parent=0 // pred_region
    _
  $region33: #{critic_forward.1} parent=0 // pred_fallthru
    _
  // Predicated region
  $region34: #{critic_forward.1} parent=0 // pred_check
    _
  $region35: #{critic_forward.1} parent=0 // pred_check_branch
    %536 = sbr.rel (0) target = $region37
  $region36: #{critic_forward.1} parent=0 // pred_region
    _
  $region37: #{critic_forward.1} parent=0 // pred_fallthru
    _

</llo_original>
